<compile_context>
chip_gen: v5e
topology: v5e:2x2
jax: 0.10.0
libtpu: 0.0.40
codegen_flags: <defaults>
</compile_context>

<pallas_src>
import math

import jax
import jax.numpy as jnp
import numpy as np
from jax.experimental import pallas as pl
from jax.experimental.pallas import tpu as pltpu

LANE = 128
SUBLANE = 8


def _round_up(x, m):
    return ((x + m - 1) // m) * m


# ---------------------------------------------------------------------------
# Fused OutBlock kernel: y = relu(x @ w1) @ w2   (bf16 MXU operands, f32 acc)
# ---------------------------------------------------------------------------
def _outblock_kernel(x_ref, w1_ref, w2_ref, o_ref):
    h = jnp.dot(x_ref[...], w1_ref[...],
                preferred_element_type=jnp.float32)          # (TILE, in_p) f32
    h = jnp.maximum(h, 0.0)                                  # ReLU on the VPU
    o_ref[...] = jnp.dot(h.astype(jnp.bfloat16), w2_ref[...],
                         preferred_element_type=jnp.float32)  # lane-dense store


# ---------------------------------------------------------------------------
# One-time parameter packing: pad to TPU-friendly shapes, cast to bf16.
# ---------------------------------------------------------------------------
def pack_params(w1, w2):
    """w1: (in_dim, in_dim), w2: (in_dim, out_dim)  (torch weight.T layout)."""
    in_dim = w1.shape[0]
    out_dim = w2.shape[1]
    in_p = _round_up(in_dim, LANE)
    out_p = _round_up(out_dim, LANE)
    w1p = jnp.zeros((in_p, in_p), jnp.float32).at[:in_dim, :in_dim].set(w1)
    w2p = jnp.zeros((in_p, out_p), jnp.float32).at[:in_dim, :out_dim].set(w2)
    return {
        "w1": w1p.astype(jnp.bfloat16),
        "w2": w2p.astype(jnp.bfloat16),
        "in_dim": in_dim,
        "out_dim": out_dim,
    }


# ---------------------------------------------------------------------------
# Wrapper: row tiling + bf16 cast + lane-dense padded output slab.
# ---------------------------------------------------------------------------
def out_block(x, packed, *, row_tile=256):
    in_dim = packed["in_dim"]
    out_dim = packed["out_dim"]
    in_p = packed["w1"].shape[0]
    out_p = packed["w2"].shape[1]

    lead = x.shape[:-1]
    rows = 1
    for s in lead:
        rows *= int(s)
    x2 = x.reshape(rows, in_dim)

    # Pick a row tile: 256 for realistic sizes, otherwise the (8-aligned) full
    # row count so tiny demo shapes still satisfy the (8, 128) block rule.
    tile = row_tile if rows >= row_tile else _round_up(rows, SUBLANE)
    rows_p = _round_up(rows, tile)

    # Cast to bf16 + pad in the wrapper (halves HBM->VMEM traffic vs. casting
    # inside the kernel).
    xb = jnp.zeros((rows_p, in_p), jnp.bfloat16).at[:rows, :in_dim].set(
        x2.astype(jnp.bfloat16))

    out = pl.pallas_call(
        _outblock_kernel,
        out_shape=jax.ShapeDtypeStruct((rows_p, out_p), jnp.float32),
        grid=(rows_p // tile,),
        in_specs=[
            pl.BlockSpec((tile, in_p), lambda i: (i, 0)),    # row-tiled input
            pl.BlockSpec((in_p, in_p), lambda i: (0, 0)),    # resident weights
            pl.BlockSpec((in_p, out_p), lambda i: (0, 0)),   # resident weights
        ],
        out_specs=pl.BlockSpec((tile, out_p), lambda i: (i, 0)),
        compiler_params=pltpu.CompilerParams(
            dimension_semantics=("parallel",)),
    )(xb, packed["w1"], packed["w2"])

    return out[:rows, :out_dim].reshape(*lead, out_dim)


# ---------------------------------------------------------------------------
# Demo / self-check
# ---------------------------------------------------------------------------
if __name__ == "__main__":
    key = jax.random.PRNGKey(0)
    kx, k1, k2 = jax.random.split(key, 3)

    # Shapes consistent with the FCGNN usage of OutBlock: in_dim=256,
    # out_dim=2 (offset head), rows = batch * keypoints = 2 * 8.
    B, L, IN_DIM, OUT_DIM = 2, 8, 256, 2

    x = jax.random.normal(kx, (B, L, IN_DIM), jnp.float32)
    w1 = jax.random.normal(k1, (IN_DIM, IN_DIM), jnp.float32) / math.sqrt(IN_DIM)
    w2 = jax.random.normal(k2, (IN_DIM, OUT_DIM), jnp.float32) / math.sqrt(IN_DIM)

    packed = pack_params(w1, w2)          # one-time pack/pad/bf16 (outside jit)

    fwd = jax.jit(lambda xx: out_block(xx, packed))
    y = fwd(x)
    jax.block_until_ready(y)

    # Pure-JAX reference with the same bf16-operand / f32-accumulate numerics.
    xb = x.astype(jnp.bfloat16)
    h = jnp.maximum(jnp.dot(xb, w1.astype(jnp.bfloat16),
                            preferred_element_type=jnp.float32), 0.0)
    ref = jnp.dot(h.astype(jnp.bfloat16), w2.astype(jnp.bfloat16),
                  preferred_element_type=jnp.float32)

    assert y.shape == (B, L, OUT_DIM)
    assert bool(jnp.all(jnp.isfinite(y)))
    np.testing.assert_allclose(np.asarray(y), np.asarray(ref),
                               rtol=2e-2, atol=2e-2)
    print("KERNEL_OK")
</pallas_src>

<mosaic_0001>
module attributes {stable_mosaic.version = 11 : i64} {
  func.func @_outblock_kernel(%arg0: i32, %arg1: memref<16x256xbf16, #tpu.memory_space<vmem>>, %arg2: memref<256x256xbf16, #tpu.memory_space<vmem>>, %arg3: memref<256x128xbf16, #tpu.memory_space<vmem>>, %arg4: memref<16x128xf32, #tpu.memory_space<vmem>>) attributes {dimension_semantics = [#tpu.dimension_semantics<parallel>], iteration_bounds = array<i64: 1>, scalar_prefetch = 0 : i64, scratch_operands = 0 : i64, tpu.core_type = #tpu.core_type<tc>, window_params = [{transform_indices = @transform_0, window_bounds = array<i64: 16, 256>}, {pipeline_mode = #tpu.pipeline_mode<synchronous>, transform_indices = @transform_1, window_bounds = array<i64: 256, 256>}, {pipeline_mode = #tpu.pipeline_mode<synchronous>, transform_indices = @transform_2, window_bounds = array<i64: 256, 128>}, {transform_indices = @transform_3, window_bounds = array<i64: 16, 128>}]} {
    %c0 = arith.constant 0 : index
    %c0_0 = arith.constant 0 : index
    %0 = vector.load %arg1[%c0, %c0_0] : memref<16x256xbf16, #tpu.memory_space<vmem>>, vector<16x256xbf16>
    %c0_1 = arith.constant 0 : index
    %c0_2 = arith.constant 0 : index
    %1 = vector.load %arg2[%c0_1, %c0_2] : memref<256x256xbf16, #tpu.memory_space<vmem>>, vector<256x256xbf16>
    %cst = arith.constant dense<0.000000e+00> : vector<16x256xf32>
    %2 = tpu.matmul %0, %1, %cst {dimension_numbers = #tpu.dot_dimension_numbers<[1], [0], [0], [1], [0, 0, 1, 1], [], []>} : vector<16x256xbf16>, vector<256x256xbf16>, vector<16x256xf32> -> vector<16x256xf32>
    %cst_3 = arith.constant 0.000000e+00 : f32
    %3 = vector.broadcast %cst_3 : f32 to vector<16x256xf32>
    %4 = arith.maximumf %2, %3 : vector<16x256xf32>
    %5 = arith.truncf %4 : vector<16x256xf32> to vector<16x256xbf16>
    %c0_4 = arith.constant 0 : index
    %c0_5 = arith.constant 0 : index
    %6 = vector.load %arg3[%c0_4, %c0_5] : memref<256x128xbf16, #tpu.memory_space<vmem>>, vector<256x128xbf16>
    %cst_6 = arith.constant dense<0.000000e+00> : vector<16x128xf32>
    %7 = tpu.matmul %5, %6, %cst_6 {dimension_numbers = #tpu.dot_dimension_numbers<[1], [0], [0], [1], [0, 0, 1, 1], [], []>} : vector<16x256xbf16>, vector<256x128xbf16>, vector<16x128xf32> -> vector<16x128xf32>
    %c0_7 = arith.constant 0 : index
    %c0_8 = arith.constant 0 : index
    %8 = vector.load %arg4[%c0_7, %c0_8] : memref<16x128xf32, #tpu.memory_space<vmem>>, vector<16x128xf32>
    tpu.vector_store %arg4[%c0_7, %c0_8], %7 {strides = array<i32>} : memref<16x128xf32, #tpu.memory_space<vmem>>, vector<16x128xf32>,
    return
  }
  func.func @transform_0(%arg0: i32) -> (i32, i32) {
    %c0_i32 = arith.constant 0 : i32
    %c0_i32_0 = arith.constant 0 : i32
    return %arg0, %c0_i32 : i32, i32
  }
  func.func @transform_1(%arg0: i32) -> (i32, i32) {
    %c0_i32 = arith.constant 0 : i32
    %c0_i32_0 = arith.constant 0 : i32
    %c0_i32_1 = arith.constant 0 : i32
    return %c0_i32, %c0_i32_0 : i32, i32
  }
  func.func @transform_2(%arg0: i32) -> (i32, i32) {
    %c0_i32 = arith.constant 0 : i32
    %c0_i32_0 = arith.constant 0 : i32
    %c0_i32_1 = arith.constant 0 : i32
    return %c0_i32, %c0_i32_0 : i32, i32
  }
  func.func @transform_3(%arg0: i32) -> (i32, i32) {
    %c0_i32 = arith.constant 0 : i32
    %c0_i32_0 = arith.constant 0 : i32
    return %arg0, %c0_i32 : i32, i32
  }
}

</mosaic_0001>

<llo_original>
// kernel: _lambda_.1
$region0: #{_lambda_.1}
  #allocation0 [shape = 'u32[]', space=smem, size = 0x4, offset = 0x4, fixed_abs, tag = 'smem constant byte address 0x4 - core index']
  #allocation1 [shape = 'u32[72,128]{1,0:T(1,128)}', space=vmem, size = 0x9000, scoped, tag = 'internal scratch']
  %s0 = inlined_call_operand.vmem [shape: bf16[16,256], index: 0, kind: input, shape index: {}]
  %s1 = inlined_call_operand.hbm [shape: bf16[256,256], index: 1, kind: input, shape index: {}]
  %s2 = inlined_call_operand.hbm [shape: bf16[256,128], index: 2, kind: input, shape index: {}]
  %s3 = inlined_call_operand.vmem [shape: f32[16,128], index: 3, kind: output, shape index: {}]
  %s4 = sld [smem:[#allocation0]]
  $region30: #{_lambda_.1} parent=0
    _
  %s6 = ssub.s32 1, %s4
  %s7 = scalar_select 0, %s6, %s4
  $region1: #{_lambda_.1} parent=0
    #allocation2 [shape = 'u8[131072]{0}', space=vmem, size = 0x20000, scoped, tag = 'input window, operand 1, single buffered']
    #allocation3 [shape = 's32[1]{0}', space=sflag, size = 0x4, scoped, tag = 'scoped memory for _lambda_.1']
    #allocation4 [shape = 'u8[65536]{0}', space=vmem, size = 0x10000, scoped, tag = 'input window, operand 2, single buffered']
    #allocation5 [shape = 's32[1]{0}', space=sflag, size = 0x4, scoped, tag = 'scoped memory for _lambda_.1']
    %8 = vsyncpa [#allocation3], 0
    %9 = vsyncpa [#allocation5], 0
    // Predicated region
    $region2: #{_lambda_.1} parent=1 // pred_check
      _
    $region3: #{_lambda_.1} parent=1 // pred_check_branch
      %11 = sbr.rel (0) target = $region5
    $region4: #{_lambda_.1} parent=1 // pred_region
      _
    $region5: #{_lambda_.1} parent=1 // pred_fallthru
      _
    // Predicated region
    $region6: #{_lambda_.1} parent=1 // pred_check
      _
    $region7: #{_lambda_.1} parent=1 // pred_check_branch
      %13 = sbr.rel (0) target = $region9
    $region8: #{_lambda_.1} parent=1 // pred_region
      %15 = vsyncadd [#allocation3], 0
      %s16 = sshll.u32 %s1, 4
      %s17 = int_to_ptr.hbm [resolvable:$true] %s16
      %s18 = sshll.u32 [#allocation2], 4
      %s19 = int_to_ptr.vmem [resolvable:$true] %s18
      %24 = dma.hbm_to_vmem [thread:$0]  %s17, 4096, %s19, [#allocation3], 128, 128, 8
    $region9: #{_lambda_.1} parent=1 // pred_fallthru
      _
    // Predicated region
    $region10: #{_lambda_.1} parent=1 // pred_check
      _
    $region11: #{_lambda_.1} parent=1 // pred_check_branch
      %26 = sbr.rel (0) target = $region13
    $region12: #{_lambda_.1} parent=1 // pred_region
      %28 = vsyncadd [#allocation5], 0
      %s29 = sshll.u32 %s2, 4
      %s30 = int_to_ptr.hbm [resolvable:$true] %s29
      %s31 = sshll.u32 [#allocation4], 4
      %s32 = int_to_ptr.vmem [resolvable:$true] %s31
      %37 = dma.hbm_to_vmem [thread:$0]  %s30, 2048, %s32, [#allocation5], 64, 64, 4
    $region13: #{_lambda_.1} parent=1 // pred_fallthru
      _
    // Predicated region
    $region14: #{_lambda_.1} parent=1 // pred_check
      _
    $region15: #{_lambda_.1} parent=1 // pred_check_branch
      %39 = sbr.rel (0) target = $region17
    $region16: #{_lambda_.1} parent=1 // pred_region
      %41 = dma.done [#allocation3], 4096
    $region17: #{_lambda_.1} parent=1 // pred_fallthru
      _
    // Predicated region
    $region18: #{_lambda_.1} parent=1 // pred_check
      _
    $region19: #{_lambda_.1} parent=1 // pred_check_branch
      %43 = sbr.rel (0) target = $region21
    $region20: #{_lambda_.1} parent=1 // pred_region
      %45 = dma.done [#allocation5], 2048
    $region21: #{_lambda_.1} parent=1 // pred_fallthru
      _
    %v46 = vld [vmem:[%s0] sm:$0xff]
    %v47 = vld [vmem:[%s0 + $0x8] sm:$0xff]
    %v48 = vld [vmem:[#allocation2] sm:$0xff]
    %v49 = vld [vmem:[#allocation2 + $0x8] sm:$0xff]
    %v50 = vld [vmem:[#allocation2 + $0x10] sm:$0xff]
    %v51 = vld [vmem:[#allocation2 + $0x18] sm:$0xff]
    %v52 = vld [vmem:[#allocation2 + $0x20] sm:$0xff]
    %v53 = vld [vmem:[#allocation2 + $0x28] sm:$0xff]
    %v54 = vld [vmem:[#allocation2 + $0x30] sm:$0xff]
    %v55 = vld [vmem:[#allocation2 + $0x38] sm:$0xff]
    %v56 = vld [vmem:[#allocation2 + $0x40] sm:$0xff]
    %v57 = vld [vmem:[#allocation2 + $0x48] sm:$0xff]
    %v58 = vld [vmem:[#allocation2 + $0x50] sm:$0xff]
    %v59 = vld [vmem:[#allocation2 + $0x58] sm:$0xff]
    %v60 = vld [vmem:[#allocation2 + $0x60] sm:$0xff]
    %v61 = vld [vmem:[#allocation2 + $0x68] sm:$0xff]
    %v62 = vld [vmem:[#allocation2 + $0x70] sm:$0xff]
    %v63 = vld [vmem:[#allocation2 + $0x78] sm:$0xff]
    %v64 = vld [vmem:[#allocation2 + $0x80] sm:$0xff]
    %v65 = vld [vmem:[#allocation2 + $0x88] sm:$0xff]
    %v66 = vld [vmem:[#allocation2 + $0x90] sm:$0xff]
    %v67 = vld [vmem:[#allocation2 + $0x98] sm:$0xff]
    %v68 = vld [vmem:[#allocation2 + $0xa0] sm:$0xff]
    %v69 = vld [vmem:[#allocation2 + $0xa8] sm:$0xff]
    %v70 = vld [vmem:[#allocation2 + $0xb0] sm:$0xff]
    %v71 = vld [vmem:[#allocation2 + $0xb8] sm:$0xff]
    %v72 = vld [vmem:[#allocation2 + $0xc0] sm:$0xff]
    %v73 = vld [vmem:[#allocation2 + $0xc8] sm:$0xff]
    %v74 = vld [vmem:[#allocation2 + $0xd0] sm:$0xff]
    %v75 = vld [vmem:[#allocation2 + $0xd8] sm:$0xff]
    %v76 = vld [vmem:[#allocation2 + $0xe0] sm:$0xff]
    %v77 = vld [vmem:[#allocation2 + $0xe8] sm:$0xff]
    %v78 = vld [vmem:[#allocation2 + $0xf0] sm:$0xff]
    %v79 = vld [vmem:[#allocation2 + $0xf8] sm:$0xff]
    %v82 = vunpack.c.l.b16 %v46
    %v83 = vunpack.c.h.b16 %v46
    %v84 = vunpack.c.l.b16 %v47
    %v85 = vunpack.c.h.b16 %v47
    %v86 = vpack.c.b16 %v84, %v82
    %v87 = vpack.c.b16 %v85, %v83
    %v122 = vunpack.c.l.b16 %v48
    %v123 = vunpack.c.h.b16 %v48
    %v124 = vunpack.c.l.b16 %v49
    %v125 = vunpack.c.h.b16 %v49
    %v126 = vunpack.c.l.b16 %v50
    %v127 = vunpack.c.h.b16 %v50
    %v128 = vunpack.c.l.b16 %v51
    %v129 = vunpack.c.h.b16 %v51
    %v130 = vunpack.c.l.b16 %v52
    %v131 = vunpack.c.h.b16 %v52
    %v132 = vunpack.c.l.b16 %v53
    %v133 = vunpack.c.h.b16 %v53
    %v134 = vunpack.c.l.b16 %v54
    %v135 = vunpack.c.h.b16 %v54
    %v136 = vunpack.c.l.b16 %v55
    %v137 = vunpack.c.h.b16 %v55
    %v138 = vunpack.c.l.b16 %v56
    %v139 = vunpack.c.h.b16 %v56
    %v140 = vunpack.c.l.b16 %v57
    %v141 = vunpack.c.h.b16 %v57
    %v142 = vunpack.c.l.b16 %v58
    %v143 = vunpack.c.h.b16 %v58
    %v144 = vunpack.c.l.b16 %v59
    %v145 = vunpack.c.h.b16 %v59
    %v146 = vunpack.c.l.b16 %v60
    %v147 = vunpack.c.h.b16 %v60
    %v148 = vunpack.c.l.b16 %v61
    %v149 = vunpack.c.h.b16 %v61
    %v150 = vunpack.c.l.b16 %v62
    %v151 = vunpack.c.h.b16 %v62
    %v152 = vunpack.c.l.b16 %v63
    %v153 = vunpack.c.h.b16 %v63
    %v154 = vunpack.c.l.b16 %v64
    %v155 = vunpack.c.h.b16 %v64
    %v156 = vunpack.c.l.b16 %v65
    %v157 = vunpack.c.h.b16 %v65
    %v158 = vunpack.c.l.b16 %v66
    %v159 = vunpack.c.h.b16 %v66
    %v160 = vunpack.c.l.b16 %v67
    %v161 = vunpack.c.h.b16 %v67
    %v162 = vunpack.c.l.b16 %v68
    %v163 = vunpack.c.h.b16 %v68
    %v164 = vunpack.c.l.b16 %v69
    %v165 = vunpack.c.h.b16 %v69
    %v166 = vunpack.c.l.b16 %v70
    %v167 = vunpack.c.h.b16 %v70
    %v168 = vunpack.c.l.b16 %v71
    %v169 = vunpack.c.h.b16 %v71
    %v170 = vunpack.c.l.b16 %v72
    %v171 = vunpack.c.h.b16 %v72
    %v172 = vunpack.c.l.b16 %v73
    %v173 = vunpack.c.h.b16 %v73
    %v174 = vunpack.c.l.b16 %v74
    %v175 = vunpack.c.h.b16 %v74
    %v176 = vunpack.c.l.b16 %v75
    %v177 = vunpack.c.h.b16 %v75
    %v178 = vunpack.c.l.b16 %v76
    %v179 = vunpack.c.h.b16 %v76
    %v180 = vunpack.c.l.b16 %v77
    %v181 = vunpack.c.h.b16 %v77
    %v182 = vunpack.c.l.b16 %v78
    %v183 = vunpack.c.h.b16 %v78
    %v184 = vunpack.c.l.b16 %v79
    %v185 = vunpack.c.h.b16 %v79
    %v186 = vpack.c.b16 %v124, %v122
    %v187 = vpack.c.b16 %v125, %v123
    %v188 = vpack.c.b16 %v128, %v126
    %v189 = vpack.c.b16 %v129, %v127
    %v190 = vpack.c.b16 %v132, %v130
    %v191 = vpack.c.b16 %v133, %v131
    %v192 = vpack.c.b16 %v136, %v134
    %v193 = vpack.c.b16 %v137, %v135
    %v194 = vpack.c.b16 %v140, %v138
    %v195 = vpack.c.b16 %v141, %v139
    %v196 = vpack.c.b16 %v144, %v142
    %v197 = vpack.c.b16 %v145, %v143
    %v198 = vpack.c.b16 %v148, %v146
    %v199 = vpack.c.b16 %v149, %v147
    %v200 = vpack.c.b16 %v152, %v150
    %v201 = vpack.c.b16 %v153, %v151
    %v202 = vpack.c.b16 %v156, %v154
    %v203 = vpack.c.b16 %v157, %v155
    %v204 = vpack.c.b16 %v160, %v158
    %v205 = vpack.c.b16 %v161, %v159
    %v206 = vpack.c.b16 %v164, %v162
    %v207 = vpack.c.b16 %v165, %v163
    %v208 = vpack.c.b16 %v168, %v166
    %v209 = vpack.c.b16 %v169, %v167
    %v210 = vpack.c.b16 %v172, %v170
    %v211 = vpack.c.b16 %v173, %v171
    %v212 = vpack.c.b16 %v176, %v174
    %v213 = vpack.c.b16 %v177, %v175
    %v214 = vpack.c.b16 %v180, %v178
    %v215 = vpack.c.b16 %v181, %v179
    %v216 = vpack.c.b16 %v184, %v182
    %v217 = vpack.c.b16 %v185, %v183
    %250 = vmatpush.bf16.msra.mxu0 %v200
    %251 = vmatpush.bf16.msra.mxu0 %v198
    %252 = vmatpush.bf16.msra.mxu0 %v196
    %253 = vmatpush.bf16.msra.mxu0 %v194
    %254 = vmatpush.bf16.msra.mxu0 %v192
    %255 = vmatpush.bf16.msra.mxu0 %v190
    %256 = vmatpush.bf16.msra.mxu0 %v188
    %257 = vmatpush.bf16.msra.mxu0 %v186
    %258 = vmatmul.bf16.gmra.mxu0 %v86
    %v259 = vpop.f32.mrf.mxu0
    %v260 = vadd.f32 0.0, %v259
    %v261 = vpop.f32.mrf.mxu0
    %v262 = vadd.f32 0.0, %v261
    %263 = vdwg.mxu0
    %264 = vmatpush.bf16.msra.mxu0 %v216
    %265 = vmatpush.bf16.msra.mxu0 %v214
    %266 = vmatpush.bf16.msra.mxu0 %v212
    %267 = vmatpush.bf16.msra.mxu0 %v210
    %268 = vmatpush.bf16.msra.mxu0 %v208
    %269 = vmatpush.bf16.msra.mxu0 %v206
    %270 = vmatpush.bf16.msra.mxu0 %v204
    %271 = vmatpush.bf16.msra.mxu0 %v202
    %272 = vmatmul.bf16.gmra.mxu0 %v87
    %v273 = vpop.f32.mrf.mxu0
    %v274 = vadd.f32 %v260, %v273
    %v275 = vpop.f32.mrf.mxu0
    %v276 = vadd.f32 %v262, %v275
    %277 = vdwg.mxu0
    %278 = vmatpush.bf16.msra.mxu0 %v201
    %279 = vmatpush.bf16.msra.mxu0 %v199
    %280 = vmatpush.bf16.msra.mxu0 %v197
    %281 = vmatpush.bf16.msra.mxu0 %v195
    %282 = vmatpush.bf16.msra.mxu0 %v193
    %283 = vmatpush.bf16.msra.mxu0 %v191
    %284 = vmatpush.bf16.msra.mxu0 %v189
    %285 = vmatpush.bf16.msra.mxu0 %v187
    %286 = vmatmul.bf16.gmra.mxu0 %v86
    %v287 = vpop.f32.mrf.mxu0
    %v288 = vadd.f32 0.0, %v287
    %v289 = vpop.f32.mrf.mxu0
    %v290 = vadd.f32 0.0, %v289
    %291 = vdwg.mxu0
    %292 = vmatpush.bf16.msra.mxu0 %v217
    %293 = vmatpush.bf16.msra.mxu0 %v215
    %294 = vmatpush.bf16.msra.mxu0 %v213
    %295 = vmatpush.bf16.msra.mxu0 %v211
    %296 = vmatpush.bf16.msra.mxu0 %v209
    %297 = vmatpush.bf16.msra.mxu0 %v207
    %298 = vmatpush.bf16.msra.mxu0 %v205
    %299 = vmatpush.bf16.msra.mxu0 %v203
    %300 = vmatmul.bf16.gmra.mxu0 %v87
    %v301 = vpop.f32.mrf.mxu0
    %v302 = vadd.f32 %v288, %v301
    %v303 = vpop.f32.mrf.mxu0
    %v304 = vadd.f32 %v290, %v303
    %305 = vdwg.mxu0
    %v306 = vmax.f32 %v274, 0.0
    %v307 = vmax.f32 %v302, 0.0
    %v308 = vmax.f32 %v276, 0.0
    %v309 = vmax.f32 %v304, 0.0
    %v310 = vpack.c.bf16 %v308, %v306
    %v311 = vpack.c.bf16 %v309, %v307
    %v312 = vld [vmem:[#allocation4] sm:$0xf]
    %v313 = vld [vmem:[#allocation4 + $0x4] sm:$0xf]
    %v314 = vld [vmem:[#allocation4 + $0x8] sm:$0xf]
    %v315 = vld [vmem:[#allocation4 + $0xc] sm:$0xf]
    %v316 = vld [vmem:[#allocation4 + $0x10] sm:$0xf]
    %v317 = vld [vmem:[#allocation4 + $0x14] sm:$0xf]
    %v318 = vld [vmem:[#allocation4 + $0x18] sm:$0xf]
    %v319 = vld [vmem:[#allocation4 + $0x1c] sm:$0xf]
    %v320 = vld [vmem:[#allocation4 + $0x20] sm:$0xf]
    %v321 = vld [vmem:[#allocation4 + $0x24] sm:$0xf]
    %v322 = vld [vmem:[#allocation4 + $0x28] sm:$0xf]
    %v323 = vld [vmem:[#allocation4 + $0x2c] sm:$0xf]
    %v324 = vld [vmem:[#allocation4 + $0x30] sm:$0xf]
    %v325 = vld [vmem:[#allocation4 + $0x34] sm:$0xf]
    %v326 = vld [vmem:[#allocation4 + $0x38] sm:$0xf]
    %v327 = vld [vmem:[#allocation4 + $0x3c] sm:$0xf]
    %v328 = vld [vmem:[#allocation4 + $0x40] sm:$0xf]
    %v329 = vld [vmem:[#allocation4 + $0x44] sm:$0xf]
    %v330 = vld [vmem:[#allocation4 + $0x48] sm:$0xf]
    %v331 = vld [vmem:[#allocation4 + $0x4c] sm:$0xf]
    %v332 = vld [vmem:[#allocation4 + $0x50] sm:$0xf]
    %v333 = vld [vmem:[#allocation4 + $0x54] sm:$0xf]
    %v334 = vld [vmem:[#allocation4 + $0x58] sm:$0xf]
    %v335 = vld [vmem:[#allocation4 + $0x5c] sm:$0xf]
    %v336 = vld [vmem:[#allocation4 + $0x60] sm:$0xf]
    %v337 = vld [vmem:[#allocation4 + $0x64] sm:$0xf]
    %v338 = vld [vmem:[#allocation4 + $0x68] sm:$0xf]
    %v339 = vld [vmem:[#allocation4 + $0x6c] sm:$0xf]
    %v340 = vld [vmem:[#allocation4 + $0x70] sm:$0xf]
    %v341 = vld [vmem:[#allocation4 + $0x74] sm:$0xf]
    %v342 = vld [vmem:[#allocation4 + $0x78] sm:$0xf]
    %v343 = vld [vmem:[#allocation4 + $0x7c] sm:$0xf]
    %v376 = vunpack.c.l.b16 %v312
    %v377 = vunpack.c.l.b16 %v313
    %v378 = vunpack.c.l.b16 %v314
    %v379 = vunpack.c.l.b16 %v315
    %v380 = vunpack.c.l.b16 %v316
    %v381 = vunpack.c.l.b16 %v317
    %v382 = vunpack.c.l.b16 %v318
    %v383 = vunpack.c.l.b16 %v319
    %v384 = vunpack.c.l.b16 %v320
    %v385 = vunpack.c.l.b16 %v321
    %v386 = vunpack.c.l.b16 %v322
    %v387 = vunpack.c.l.b16 %v323
    %v388 = vunpack.c.l.b16 %v324
    %v389 = vunpack.c.l.b16 %v325
    %v390 = vunpack.c.l.b16 %v326
    %v391 = vunpack.c.l.b16 %v327
    %v392 = vunpack.c.l.b16 %v328
    %v393 = vunpack.c.l.b16 %v329
    %v394 = vunpack.c.l.b16 %v330
    %v395 = vunpack.c.l.b16 %v331
    %v396 = vunpack.c.l.b16 %v332
    %v397 = vunpack.c.l.b16 %v333
    %v398 = vunpack.c.l.b16 %v334
    %v399 = vunpack.c.l.b16 %v335
    %v400 = vunpack.c.l.b16 %v336
    %v401 = vunpack.c.l.b16 %v337
    %v402 = vunpack.c.l.b16 %v338
    %v403 = vunpack.c.l.b16 %v339
    %v404 = vunpack.c.l.b16 %v340
    %v405 = vunpack.c.l.b16 %v341
    %v406 = vunpack.c.l.b16 %v342
    %v407 = vunpack.c.l.b16 %v343
    %v408 = vpack.c.b16 %v377, %v376
    %v409 = vpack.c.b16 %v379, %v378
    %v410 = vpack.c.b16 %v381, %v380
    %v411 = vpack.c.b16 %v383, %v382
    %v412 = vpack.c.b16 %v385, %v384
    %v413 = vpack.c.b16 %v387, %v386
    %v414 = vpack.c.b16 %v389, %v388
    %v415 = vpack.c.b16 %v391, %v390
    %v416 = vpack.c.b16 %v393, %v392
    %v417 = vpack.c.b16 %v395, %v394
    %v418 = vpack.c.b16 %v397, %v396
    %v419 = vpack.c.b16 %v399, %v398
    %v420 = vpack.c.b16 %v401, %v400
    %v421 = vpack.c.b16 %v403, %v402
    %v422 = vpack.c.b16 %v405, %v404
    %v423 = vpack.c.b16 %v407, %v406
    %440 = vmatpush.bf16.msra.mxu0 %v415
    %441 = vmatpush.bf16.msra.mxu0 %v414
    %442 = vmatpush.bf16.msra.mxu0 %v413
    %443 = vmatpush.bf16.msra.mxu0 %v412
    %444 = vmatpush.bf16.msra.mxu0 %v411
    %445 = vmatpush.bf16.msra.mxu0 %v410
    %446 = vmatpush.bf16.msra.mxu0 %v409
    %447 = vmatpush.bf16.msra.mxu0 %v408
    %448 = vmatmul.bf16.gmra.mxu0 %v310
    %v449 = vpop.f32.mrf.mxu0
    %v450 = vadd.f32 0.0, %v449
    %v451 = vpop.f32.mrf.mxu0
    %v452 = vadd.f32 0.0, %v451
    %453 = vdwg.mxu0
    %454 = vmatpush.bf16.msra.mxu0 %v423
    %455 = vmatpush.bf16.msra.mxu0 %v422
    %456 = vmatpush.bf16.msra.mxu0 %v421
    %457 = vmatpush.bf16.msra.mxu0 %v420
    %458 = vmatpush.bf16.msra.mxu0 %v419
    %459 = vmatpush.bf16.msra.mxu0 %v418
    %460 = vmatpush.bf16.msra.mxu0 %v417
    %461 = vmatpush.bf16.msra.mxu0 %v416
    %462 = vmatmul.bf16.gmra.mxu0 %v311
    %v463 = vpop.f32.mrf.mxu0
    %v464 = vadd.f32 %v450, %v463
    %v465 = vpop.f32.mrf.mxu0
    %v466 = vadd.f32 %v452, %v465
    %467 = vdwg.mxu0
    %468 = vst [vmem:[%s3] sm:$0xff] %v464
    %469 = vst [vmem:[%s3 + $0x8] sm:$0xff] %v466
    // Predicated region
    $region22: #{_lambda_.1} parent=1 // pred_check
      _
    $region23: #{_lambda_.1} parent=1 // pred_check_branch
      %471 = sbr.rel (0) target = $region25
    $region24: #{_lambda_.1} parent=1 // pred_region
      _
    $region25: #{_lambda_.1} parent=1 // pred_fallthru
      _
    // Predicated region
    $region26: #{_lambda_.1} parent=1 // pred_check
      _
    $region27: #{_lambda_.1} parent=1 // pred_check_branch
      %473 = sbr.rel (0) target = $region29
    $region28: #{_lambda_.1} parent=1 // pred_region
      _
    $region29: #{_lambda_.1} parent=1 // pred_fallthru
      _
    %474 = vsyncpa [#allocation3], 1
    %475 = vsyncpa [#allocation5], 1

</llo_original>
